<compile_context>
chip_gen: v6e
topology: v6e:2x2x1
jax: 0.10.0
libtpu: 0.0.40
codegen_flags: <defaults>
</compile_context>

<pallas_src>
import functools
import math

import jax
import jax.numpy as jnp
from jax import lax
from jax.experimental import pallas as pl
from jax.experimental.pallas import tpu as pltpu


def _round_up(v: int, m: int) -> int:
    return (v + m - 1) // m * m


def _lora_kernel(x_ref, w_ref, a_ref, bm_ref, bias_ref, scale_ref,
                 o_ref, acc_ref, t_ref, *, mxu_dtype):
    """One (i, j, k) grid step.

    x_ref    : (TM, TK)  VMEM   activation tile
    w_ref    : (TN, TK)  VMEM   frozen W tile (out-major, NOT transposed)
    a_ref    : (Rp, TK)  VMEM   LoRA A tile
    bm_ref   : (TN, Rp)  VMEM   LoRA B tile
    bias_ref : (1, TN)   VMEM   bias tile
    scale_ref: (1, 1)    SMEM   scaling_extra
    o_ref    : (TM, TN)  VMEM   output tile (written at k == nk-1)
    acc_ref  : (TM, TN)  VMEM   f32 base-path accumulator (scratch)
    t_ref    : (TM, Rp)  VMEM   f32 LoRA intermediate accumulator (scratch)
    """
    k = pl.program_id(2)
    nk = pl.num_programs(2)

    @pl.when(k == 0)
    def _init():
        acc_ref[...] = jnp.zeros_like(acc_ref)
        t_ref[...] = jnp.zeros_like(t_ref)

    x = x_ref[...]
    w = w_ref[...]
    a = a_ref[...]
    if mxu_dtype is not None:
        x = x.astype(mxu_dtype)
        w = w.astype(mxu_dtype)
        a = a.astype(mxu_dtype)

    # Base path: (TM, TK) . (TN, TK)^T -> (TM, TN), f32 accumulate on MXU.
    acc_ref[...] += lax.dot_general(
        x, w, (((1,), (1,)), ((), ())),
        preferred_element_type=jnp.float32)

    # LoRA intermediate: (TM, TK) . (Rp, TK)^T -> (TM, Rp), accumulated over K.
    t_ref[...] += lax.dot_general(
        x, a, (((1,), (1,)), ((), ())),
        preferred_element_type=jnp.float32)

    @pl.when(k == nk - 1)
    def _finalize():
        scale = scale_ref[0, 0]
        # Scale the tiny (TM, Rp) intermediate — OUT/R fewer multiplies than
        # scaling the (TM, TN) LoRA output.  Keep accumulation in f32; cast
        # only at the MXU input.
        t_scaled = t_ref[...] * scale
        bm = bm_ref[...]
        if mxu_dtype is not None:
            t_in = t_scaled.astype(mxu_dtype)
            bm = bm.astype(mxu_dtype)
        else:
            t_in = t_scaled
        lora = lax.dot_general(
            t_in, bm, (((1,), (1,)), ((), ())),
            preferred_element_type=jnp.float32)
        # Bias added exactly once, here, in f32.
        o_ref[...] = (acc_ref[...] + bias_ref[...] + lora).astype(o_ref.dtype)


def enhanced_lora_linear(x, W, b, A, B, scaling_extra, *,
                         tm=256, tn=256, tk=512, mxu_dtype=None):
    """Fused EnhancedLoRALinear forward.

    x: (..., in_features);  W: (out, in);  b: (out,);  A: (r, in);  B: (out, r)
    Returns (..., out_features).

    Tile targets (tm, tn, tk) are sized for the v7x 64 MiB VMEM budget and are
    clamped for small problems.  mxu_dtype=jnp.bfloat16 feeds the MXU bf16
    operands with f32 accumulation (recommended on v6e/v7x).
    """
    out_features, in_features = W.shape
    r = A.shape[0]
    lead = x.shape[:-1]
    M = int(math.prod(lead)) if lead else 1
    x2d = x.reshape(M, in_features)

    # Hardware-aligned tile sizes: TM multiple of 8, TN/TK multiples of 128
    # (lane-dense output stores), clamped to the (padded) problem dims.
    tm_ = min(tm, _round_up(M, 8))
    tn_ = min(tn, _round_up(out_features, 128))
    tk_ = min(tk, _round_up(in_features, 128))
    r_p = _round_up(r, 8)

    Mp = _round_up(M, tm_)
    Np = _round_up(out_features, tn_)
    Kp = _round_up(in_features, tk_)

    def pad2(arr, s0, s1):
        if arr.shape == (s0, s1):
            return arr
        return jnp.pad(arr, ((0, s0 - arr.shape[0]), (0, s1 - arr.shape[1])))

    x_p = pad2(x2d, Mp, Kp)
    w_p = pad2(W, Np, Kp)                       # passed as-is: no W.T per call
    a_p = pad2(A, r_p, Kp)
    bm_p = pad2(B, Np, r_p)
    bias_p = pad2(b.reshape(1, out_features), 1, Np)
    scale = jnp.array([[scaling_extra]], dtype=jnp.float32)

    grid = (Mp // tm_, Np // tn_, Kp // tk_)

    out_p = pl.pallas_call(
        functools.partial(_lora_kernel, mxu_dtype=mxu_dtype),
        out_shape=jax.ShapeDtypeStruct((Mp, Np), x.dtype),
        grid=grid,
        in_specs=[
            pl.BlockSpec((tm_, tk_), lambda i, j, k: (i, k)),   # x
            pl.BlockSpec((tn_, tk_), lambda i, j, k: (j, k)),   # W  (out, in)
            pl.BlockSpec((r_p, tk_), lambda i, j, k: (0, k)),   # A  (r, in)
            pl.BlockSpec((tn_, r_p), lambda i, j, k: (j, 0)),   # B  (out, r)
            pl.BlockSpec((1, tn_), lambda i, j, k: (0, j)),     # bias
            pl.BlockSpec(memory_space=pltpu.SMEM),              # scale scalar
        ],
        out_specs=pl.BlockSpec((tm_, tn_), lambda i, j, k: (i, j)),
        scratch_shapes=[
            pltpu.VMEM((tm_, tn_), jnp.float32),   # base-path f32 accumulator
            pltpu.VMEM((tm_, r_p), jnp.float32),   # LoRA intermediate accum
        ],
        compiler_params=pltpu.CompilerParams(
            dimension_semantics=("parallel", "parallel", "arbitrary")),
    )(x_p, w_p, a_p, bm_p, bias_p, scale)

    out2d = out_p[:M, :out_features]
    return out2d.reshape(*lead, out_features)


def _reference(x, W, b, A, B, scaling_extra):
    return (x @ W.T + b) + (x @ A.T @ B.T) * scaling_extra


if __name__ == "__main__":
    # --- Test 1: module-consistent small shapes (batch=2, seq=8, hidden=32) ---
    batch, seq, in_features = 2, 8, 32
    out_features = 32
    extra_r = 8
    critical_alpha = 16.0
    scaling_extra = critical_alpha / extra_r

    key = jax.random.PRNGKey(0)
    kx, kw, kb, ka, kbb, kx2, kw2, kb2, ka2, kbb2 = jax.random.split(key, 10)

    bound = 1.0 / math.sqrt(in_features)
    W = jax.random.uniform(kw, (out_features, in_features), jnp.float32, -bound, bound)
    b = jax.random.uniform(kb, (out_features,), jnp.float32, -bound, bound)
    A = jax.random.uniform(ka, (extra_r, in_features), jnp.float32, -bound, bound)
    # lora_B_extra is zero-init in the module; use small random values so the
    # low-rank path is actually exercised (synthetic weights).
    B = 0.01 * jax.random.normal(kbb, (out_features, extra_r), jnp.float32)
    x = jax.random.normal(kx, (batch, seq, in_features), jnp.float32)

    out = jax.block_until_ready(
        enhanced_lora_linear(x, W, b, A, B, scaling_extra))
    ref = _reference(x, W, b, A, B, scaling_extra)
    assert out.shape == (batch, seq, out_features)
    assert jnp.allclose(out, ref, atol=1e-5, rtol=1e-5), "mismatch (f32)"

    # bf16 MXU operands, f32 accumulation (v6e/v7x-oriented path).
    out_bf16 = jax.block_until_ready(
        enhanced_lora_linear(x, W, b, A, B, scaling_extra,
                             mxu_dtype=jnp.bfloat16))
    assert jnp.allclose(out_bf16, ref, atol=5e-2, rtol=5e-2), "mismatch (bf16 MXU)"

    # --- Test 2: force a multi-tile (2,2,2) grid to exercise K accumulation,
    #     bias-once finalize, and the deferred LoRA contraction. -------------
    in2, out2 = 256, 256
    bound2 = 1.0 / math.sqrt(in2)
    W2 = jax.random.uniform(kw2, (out2, in2), jnp.float32, -bound2, bound2)
    b2 = jax.random.uniform(kb2, (out2,), jnp.float32, -bound2, bound2)
    A2 = jax.random.uniform(ka2, (extra_r, in2), jnp.float32, -bound2, bound2)
    B2 = 0.01 * jax.random.normal(kbb2, (out2, extra_r), jnp.float32)
    x2 = jax.random.normal(kx2, (batch, seq, in2), jnp.float32)

    out2_ = jax.block_until_ready(
        enhanced_lora_linear(x2, W2, b2, A2, B2, scaling_extra,
                             tm=8, tn=128, tk=128))
    ref2 = _reference(x2, W2, b2, A2, B2, scaling_extra)
    assert out2_.shape == (batch, seq, out2)
    assert jnp.allclose(out2_, ref2, atol=1e-4, rtol=1e-4), "mismatch (tiled)"

    print("KERNEL_OK")
</pallas_src>

<mosaic_0001>
module attributes {stable_mosaic.version = 11 : i64} {
  func.func @_lora_kernel(%arg0: i32, %arg1: i32, %arg2: i32, %arg3: memref<16x128xf32, #tpu.memory_space<vmem>>, %arg4: memref<128x128xf32, #tpu.memory_space<vmem>>, %arg5: memref<8x128xf32, #tpu.memory_space<vmem>>, %arg6: memref<128x8xf32, #tpu.memory_space<vmem>>, %arg7: memref<1x128xf32, #tpu.memory_space<vmem>>, %arg8: memref<1x1xf32, #tpu.memory_space<smem>>, %arg9: memref<16x128xf32, #tpu.memory_space<vmem>>, %arg10: memref<16x128xf32, #tpu.memory_space<vmem>>, %arg11: memref<16x8xf32, #tpu.memory_space<vmem>>) attributes {dimension_semantics = [#tpu.dimension_semantics<parallel>, #tpu.dimension_semantics<parallel>, #tpu.dimension_semantics<arbitrary>], iteration_bounds = array<i64: 1, 1, 1>, scalar_prefetch = 0 : i64, scratch_operands = 2 : i64, tpu.core_type = #tpu.core_type<tc>, window_params = [{transform_indices = @transform_0, window_bounds = array<i64: 16, 128>}, {transform_indices = @transform_1, window_bounds = array<i64: 128, 128>}, {transform_indices = @transform_2, window_bounds = array<i64: 8, 128>}, {transform_indices = @transform_3, window_bounds = array<i64: 128, 8>}, {transform_indices = @transform_4, window_bounds = array<i64: 1, 128>}, {transform_indices = @transform_5, window_bounds = array<i64: 1, 1>}, {transform_indices = @transform_6, window_bounds = array<i64: 16, 128>}]} {
    %c0_i32 = arith.constant 0 : i32
    %0 = arith.cmpi eq, %arg2, %c0_i32 : i32
    %1 = arith.extui %0 : i1 to i32
    %c0_i32_0 = arith.constant 0 : i32
    %2 = arith.cmpi ne, %1, %c0_i32_0 : i32
    scf.if %2 {
      %cst_17 = arith.constant 0.000000e+00 : f32
      %17 = vector.broadcast %cst_17 : f32 to vector<16x128xf32>
      %c0_18 = arith.constant 0 : index
      %c0_19 = arith.constant 0 : index
      %18 = vector.load %arg10[%c0_18, %c0_19] : memref<16x128xf32, #tpu.memory_space<vmem>>, vector<16x128xf32>
      tpu.vector_store %arg10[%c0_18, %c0_19], %17 {strides = array<i32>} : memref<16x128xf32, #tpu.memory_space<vmem>>, vector<16x128xf32>,
      %cst_20 = arith.constant 0.000000e+00 : f32
      %19 = vector.broadcast %cst_20 : f32 to vector<16x8xf32>
      %c0_21 = arith.constant 0 : index
      %c0_22 = arith.constant 0 : index
      %20 = vector.load %arg11[%c0_21, %c0_22] : memref<16x8xf32, #tpu.memory_space<vmem>>, vector<16x8xf32>
      tpu.vector_store %arg11[%c0_21, %c0_22], %19 {strides = array<i32>} : memref<16x8xf32, #tpu.memory_space<vmem>>, vector<16x8xf32>,
    } else {
    }
    %c0 = arith.constant 0 : index
    %c0_1 = arith.constant 0 : index
    %3 = vector.load %arg3[%c0, %c0_1] : memref<16x128xf32, #tpu.memory_space<vmem>>, vector<16x128xf32>
    %c0_2 = arith.constant 0 : index
    %c0_3 = arith.constant 0 : index
    %4 = vector.load %arg4[%c0_2, %c0_3] : memref<128x128xf32, #tpu.memory_space<vmem>>, vector<128x128xf32>
    %c0_4 = arith.constant 0 : index
    %c0_5 = arith.constant 0 : index
    %5 = vector.load %arg5[%c0_4, %c0_5] : memref<8x128xf32, #tpu.memory_space<vmem>>, vector<8x128xf32>
    %c0_6 = arith.constant 0 : index
    %c0_7 = arith.constant 0 : index
    %6 = vector.load %arg10[%c0_6, %c0_7] : memref<16x128xf32, #tpu.memory_space<vmem>>, vector<16x128xf32>
    %cst = arith.constant dense<0.000000e+00> : vector<16x128xf32>
    %7 = tpu.matmul %3, %4, %cst {dimension_numbers = #tpu.dot_dimension_numbers<[1], [1], [0], [0], [0, 0, 1, 0], [], []>} : vector<16x128xf32>, vector<128x128xf32>, vector<16x128xf32> -> vector<16x128xf32>
    %8 = arith.addf %6, %7 : vector<16x128xf32>
    %c0_8 = arith.constant 0 : index
    %c0_9 = arith.constant 0 : index
    %9 = vector.load %arg10[%c0_8, %c0_9] : memref<16x128xf32, #tpu.memory_space<vmem>>, vector<16x128xf32>
    tpu.vector_store %arg10[%c0_8, %c0_9], %8 {strides = array<i32>} : memref<16x128xf32, #tpu.memory_space<vmem>>, vector<16x128xf32>,
    %c0_10 = arith.constant 0 : index
    %c0_11 = arith.constant 0 : index
    %10 = vector.load %arg11[%c0_10, %c0_11] : memref<16x8xf32, #tpu.memory_space<vmem>>, vector<16x8xf32>
    %cst_12 = arith.constant dense<0.000000e+00> : vector<16x8xf32>
    %11 = tpu.matmul %3, %5, %cst_12 {dimension_numbers = #tpu.dot_dimension_numbers<[1], [1], [0], [0], [0, 0, 1, 0], [], []>} : vector<16x128xf32>, vector<8x128xf32>, vector<16x8xf32> -> vector<16x8xf32>
    %12 = arith.addf %10, %11 : vector<16x8xf32>
    %c0_13 = arith.constant 0 : index
    %c0_14 = arith.constant 0 : index
    %13 = vector.load %arg11[%c0_13, %c0_14] : memref<16x8xf32, #tpu.memory_space<vmem>>, vector<16x8xf32>
    tpu.vector_store %arg11[%c0_13, %c0_14], %12 {strides = array<i32>} : memref<16x8xf32, #tpu.memory_space<vmem>>, vector<16x8xf32>,
    %c0_i32_15 = arith.constant 0 : i32
    %14 = arith.cmpi eq, %arg2, %c0_i32_15 : i32
    %15 = arith.extui %14 : i1 to i32
    %c0_i32_16 = arith.constant 0 : i32
    %16 = arith.cmpi ne, %15, %c0_i32_16 : i32
    scf.if %16 {
      %c0_17 = arith.constant 0 : index
      %c0_18 = arith.constant 0 : index
      %17 = memref.load %arg8[%c0_17, %c0_18] : memref<1x1xf32, #tpu.memory_space<smem>>
      %c0_19 = arith.constant 0 : index
      %c0_20 = arith.constant 0 : index
      %18 = vector.load %arg11[%c0_19, %c0_20] : memref<16x8xf32, #tpu.memory_space<vmem>>, vector<16x8xf32>
      %19 = vector.broadcast %17 : f32 to vector<16x8xf32>
      %20 = arith.mulf %18, %19 : vector<16x8xf32>
      %c0_21 = arith.constant 0 : index
      %c0_22 = arith.constant 0 : index
      %21 = vector.load %arg6[%c0_21, %c0_22] : memref<128x8xf32, #tpu.memory_space<vmem>>, vector<128x8xf32>
      %cst_23 = arith.constant dense<0.000000e+00> : vector<16x128xf32>
      %22 = tpu.matmul %20, %21, %cst_23 {dimension_numbers = #tpu.dot_dimension_numbers<[1], [1], [0], [0], [0, 0, 1, 0], [], []>} : vector<16x8xf32>, vector<128x8xf32>, vector<16x128xf32> -> vector<16x128xf32>
      %c0_24 = arith.constant 0 : index
      %c0_25 = arith.constant 0 : index
      %23 = vector.load %arg10[%c0_24, %c0_25] : memref<16x128xf32, #tpu.memory_space<vmem>>, vector<16x128xf32>
      %c0_26 = arith.constant 0 : index
      %c0_27 = arith.constant 0 : index
      %24 = vector.load %arg7[%c0_26, %c0_27] : memref<1x128xf32, #tpu.memory_space<vmem>>, vector<1x128xf32>
      %25 = vector.broadcast %24 : vector<1x128xf32> to vector<16x128xf32>
      %26 = arith.addf %23, %25 : vector<16x128xf32>
      %27 = arith.addf %26, %22 : vector<16x128xf32>
      %c0_28 = arith.constant 0 : index
      %c0_29 = arith.constant 0 : index
      %28 = vector.load %arg9[%c0_28, %c0_29] : memref<16x128xf32, #tpu.memory_space<vmem>>, vector<16x128xf32>
      tpu.vector_store %arg9[%c0_28, %c0_29], %27 {strides = array<i32>} : memref<16x128xf32, #tpu.memory_space<vmem>>, vector<16x128xf32>,
    } else {
    }
    return
  }
  func.func @transform_0(%arg0: i32, %arg1: i32, %arg2: i32) -> (i32, i32) {
    %c0_i32 = arith.constant 0 : i32
    return %arg0, %arg2 : i32, i32
  }
  func.func @transform_1(%arg0: i32, %arg1: i32, %arg2: i32) -> (i32, i32) {
    %c0_i32 = arith.constant 0 : i32
    return %arg1, %arg2 : i32, i32
  }
  func.func @transform_2(%arg0: i32, %arg1: i32, %arg2: i32) -> (i32, i32) {
    %c0_i32 = arith.constant 0 : i32
    %c0_i32_0 = arith.constant 0 : i32
    return %c0_i32, %arg2 : i32, i32
  }
  func.func @transform_3(%arg0: i32, %arg1: i32, %arg2: i32) -> (i32, i32) {
    %c0_i32 = arith.constant 0 : i32
    %c0_i32_0 = arith.constant 0 : i32
    return %arg1, %c0_i32 : i32, i32
  }
  func.func @transform_4(%arg0: i32, %arg1: i32, %arg2: i32) -> (i32, i32) {
    %c0_i32 = arith.constant 0 : i32
    %c0_i32_0 = arith.constant 0 : i32
    return %c0_i32, %arg1 : i32, i32
  }
  func.func @transform_5(%arg0: i32, %arg1: i32, %arg2: i32) -> (i32, i32) {
    %c0_i32 = arith.constant 0 : i32
    %c0_i32_0 = arith.constant 0 : i32
    %c0_i32_1 = arith.constant 0 : i32
    return %c0_i32, %c0_i32_0 : i32, i32
  }
  func.func @transform_6(%arg0: i32, %arg1: i32, %arg2: i32) -> (i32, i32) {
    %c0_i32 = arith.constant 0 : i32
    return %arg0, %arg1 : i32, i32
  }
}

</mosaic_0001>

<llo_original>
// kernel: tpu_custom_call.1
$region0: #{tpu_custom_call.1}
  #allocation0 [shape = 'u32[]', space=smem, size = 0x4, offset = 0x4, fixed_abs, tag = 'smem constant byte address 0x4 - core index']
  #allocation1 [shape = 'u32[144,128]{1,0:T(1,128)}', space=vmem, size = 0x12000, scoped, tag = 'internal scratch']
  #allocation2 [shape = 'f32[16,128]{1,0:T(8,128)}', space=vmem, size = 0x2000, scoped, tag = 'scratch operand']
  #allocation3 [shape = 'f32[16,8]{1,0:T(8,128)}', space=vmem, size = 0x2000, scoped, tag = 'scratch operand']
  #allocation4 [shape = 'f32[1,1]{1,0:T(1,128)S(6)}', space=smem, size = 0x200, scoped, tag = 'scoped memory for tpu_custom_call.1']
  %s0 = inlined_call_operand.hbm [shape: f32[16,128], index: 0, kind: input, shape index: {}]
  %s1 = inlined_call_operand.vmem [shape: f32[128,128], index: 1, kind: input, shape index: {}]
  %s2 = inlined_call_operand.vmem [shape: f32[8,128], index: 2, kind: input, shape index: {}]
  %s3 = inlined_call_operand.vmem [shape: f32[128,8], index: 3, kind: input, shape index: {}]
  %s4 = inlined_call_operand.vmem [shape: f32[1,128], index: 4, kind: input, shape index: {}]
  %s5 = inlined_call_operand.<no memory space> [shape: f32[1,1], index: 5, kind: input, shape index: {}]
  %s6 = inlined_call_operand.hbm [shape: f32[16,128], index: 6, kind: output, shape index: {}]
  %s7 = sld [smem:[#allocation0]]
  $region46: #{tpu_custom_call.1} parent=0
    _
  %s9 = ssub.s32 1, %s7
  %s10 = scalar_select 0, %s9, %s7
  %11 = sst [smem:[#allocation4]] %s5
  $region1: #{tpu_custom_call.1} parent=0
    #allocation5 [shape = 'u8[8192]{0}', space=vmem, size = 0x2000, scoped, tag = 'input window, operand 0, single buffered']
    #allocation6 [shape = 's32[1]{0}', space=sflag, size = 0x4, scoped, tag = 'scoped memory for tpu_custom_call.1']
    #allocation7 [shape = 's32[1]{0}', space=sflag, size = 0x4, scoped, tag = 'scoped memory for tpu_custom_call.1']
    #allocation8 [shape = 'u8[8192]{0}', space=vmem, size = 0x2000, scoped, tag = 'output window, operand 0, single buffered']
    %12 = vsyncpa [#allocation6], 0
    %13 = vsyncpa [#allocation7], 0
    // Predicated region
    $region2: #{tpu_custom_call.1} parent=1 // pred_check
      _
    $region3: #{tpu_custom_call.1} parent=1 // pred_check_branch
      %15 = sbr.rel (0) target = $region5
    $region4: #{tpu_custom_call.1} parent=1 // pred_region
      %s17 = ssub.s32 256, 256
      %18 = vsyncadd [#allocation6], %s17
      %s19 = sshll.u32 [#allocation5], 4
      %s20 = int_to_ptr.vmem [resolvable:$true] %s19
      %25 = dma.hbm_to_vmem [thread:$0]  %s0, 256, %s20, [#allocation6], 128, 128, 8
    $region5: #{tpu_custom_call.1} parent=1 // pred_fallthru
      _
    // Predicated region
    $region6: #{tpu_custom_call.1} parent=1 // pred_check
      _
    $region7: #{tpu_custom_call.1} parent=1 // pred_check_branch
      %27 = sbr.rel (0) target = $region9
    $region8: #{tpu_custom_call.1} parent=1 // pred_region
      _
    $region9: #{tpu_custom_call.1} parent=1 // pred_fallthru
      _
    // Predicated region
    $region10: #{tpu_custom_call.1} parent=1 // pred_check
      _
    $region11: #{tpu_custom_call.1} parent=1 // pred_check_branch
      %29 = sbr.rel (0) target = $region13
    $region12: #{tpu_custom_call.1} parent=1 // pred_region
      _
    $region13: #{tpu_custom_call.1} parent=1 // pred_fallthru
      _
    // Predicated region
    $region14: #{tpu_custom_call.1} parent=1 // pred_check
      _
    $region15: #{tpu_custom_call.1} parent=1 // pred_check_branch
      %31 = sbr.rel (0) target = $region17
    $region16: #{tpu_custom_call.1} parent=1 // pred_region
      _
    $region17: #{tpu_custom_call.1} parent=1 // pred_fallthru
      _
    // Predicated region
    $region18: #{tpu_custom_call.1} parent=1 // pred_check
      _
    $region19: #{tpu_custom_call.1} parent=1 // pred_check_branch
      %33 = sbr.rel (0) target = $region21
    $region20: #{tpu_custom_call.1} parent=1 // pred_region
      _
    $region21: #{tpu_custom_call.1} parent=1 // pred_fallthru
      _
    // Predicated region
    $region22: #{tpu_custom_call.1} parent=1 // pred_check
      _
    $region23: #{tpu_custom_call.1} parent=1 // pred_check_branch
      %35 = sbr.rel (0) target = $region25
    $region24: #{tpu_custom_call.1} parent=1 // pred_region
      _
    $region25: #{tpu_custom_call.1} parent=1 // pred_fallthru
      _
    // Predicated region
    $region26: #{tpu_custom_call.1} parent=1 // pred_check
      _
    $region27: #{tpu_custom_call.1} parent=1 // pred_check_branch
      %37 = sbr.rel (0) target = $region29
    $region28: #{tpu_custom_call.1} parent=1 // pred_region
      %38 = dma.done [#allocation6], 256
    $region29: #{tpu_custom_call.1} parent=1 // pred_fallthru
      _
    %p39 = scmp.eq.s32.totalorder 0, 0
    // Predicated region
    $region30: #{tpu_custom_call.1} parent=1 // pred_check
      %p40 = pneg %p39
    $region31: #{tpu_custom_call.1} parent=1 // pred_check_branch
      %42 = sbr.rel (%p40) target = $region33
    $region32: #{tpu_custom_call.1} parent=1 // pred_region
      %43 = vst [vmem:[#allocation2] sm:$0xff] 0.0
      %44 = vst [vmem:[#allocation2 + $0x8] sm:$0xff] 0.0
      %vm45 = vcmask 64512
      %46 = vst.msk [vmem:[#allocation3] sm:$0xff] %vm45, 0.0
      %47 = vst.msk [vmem:[#allocation3 + $0x8] sm:$0xff] %vm45, 0.0
    $region33: #{tpu_custom_call.1} parent=1 // pred_fallthru
      _
    %v48 = vld [vmem:[#allocation5] sm:$0xff]
    %v49 = vld [vmem:[#allocation5 + $0x8] sm:$0xff]
    %v50 = vld [vmem:[%s1] sm:$0xff]
    %v51 = vld [vmem:[%s1 + $0x8] sm:$0xff]
    %v52 = vld [vmem:[%s1 + $0x10] sm:$0xff]
    %v53 = vld [vmem:[%s1 + $0x18] sm:$0xff]
    %v54 = vld [vmem:[%s1 + $0x20] sm:$0xff]
    %v55 = vld [vmem:[%s1 + $0x28] sm:$0xff]
    %v56 = vld [vmem:[%s1 + $0x30] sm:$0xff]
    %v57 = vld [vmem:[%s1 + $0x38] sm:$0xff]
    %v58 = vld [vmem:[%s1 + $0x40] sm:$0xff]
    %v59 = vld [vmem:[%s1 + $0x48] sm:$0xff]
    %v60 = vld [vmem:[%s1 + $0x50] sm:$0xff]
    %v61 = vld [vmem:[%s1 + $0x58] sm:$0xff]
    %v62 = vld [vmem:[%s1 + $0x60] sm:$0xff]
    %v63 = vld [vmem:[%s1 + $0x68] sm:$0xff]
    %v64 = vld [vmem:[%s1 + $0x70] sm:$0xff]
    %v65 = vld [vmem:[%s1 + $0x78] sm:$0xff]
    %v66 = vld [vmem:[%s2] sm:$0xff]
    %v67 = vld [vmem:[#allocation2] sm:$0xff]
    %v68 = vld [vmem:[#allocation2 + $0x8] sm:$0xff]
    %69 = vmatprep.subr.mxu0 0.0
    %70 = vmatpush1.xpose.msra.mxu0 %v65
    %71 = vmatprep.subr.mxu0 0.0
    %72 = vmatpush1.xpose.msra.mxu0 %v64
    %73 = vmatprep.subr.mxu0 0.0
    %74 = vmatpush1.xpose.msra.mxu0 %v63
    %75 = vmatprep.subr.mxu0 0.0
    %76 = vmatpush1.xpose.msra.mxu0 %v62
    %77 = vmatprep.subr.mxu0 0.0
    %78 = vmatpush1.xpose.msra.mxu0 %v61
    %79 = vmatprep.subr.mxu0 0.0
    %80 = vmatpush1.xpose.msra.mxu0 %v60
    %81 = vmatprep.subr.mxu0 0.0
    %82 = vmatpush1.xpose.msra.mxu0 %v59
    %83 = vmatprep.subr.mxu0 0.0
    %84 = vmatpush1.xpose.msra.mxu0 %v58
    %85 = vmatprep.subr.mxu0 0.0
    %86 = vmatpush1.xpose.msra.mxu0 %v57
    %87 = vmatprep.subr.mxu0 0.0
    %88 = vmatpush1.xpose.msra.mxu0 %v56
    %89 = vmatprep.subr.mxu0 0.0
    %90 = vmatpush1.xpose.msra.mxu0 %v55
    %91 = vmatprep.subr.mxu0 0.0
    %92 = vmatpush1.xpose.msra.mxu0 %v54
    %93 = vmatprep.subr.mxu0 0.0
    %94 = vmatpush1.xpose.msra.mxu0 %v53
    %95 = vmatprep.subr.mxu0 0.0
    %96 = vmatpush1.xpose.msra.mxu0 %v52
    %97 = vmatprep.subr.mxu0 0.0
    %98 = vmatpush1.xpose.msra.mxu0 %v51
    %99 = vmatprep.subr.mxu0 0.0
    %100 = vmatpush1.xpose.msra.mxu0 %v50
    %101 = vmatprep.subr.mxu0 0.0
    %102 = vmatpush2.xpose.msra.mxu0 0.0
    %103 = vmatprep.subr.mxu0 0.0
    %104 = vmatpush2.xpose.msra.mxu0 0.0
    %105 = vmatprep.subr.mxu0 0.0
    %106 = vmatpush2.xpose.msra.mxu0 0.0
    %107 = vmatprep.subr.mxu0 0.0
    %108 = vmatpush2.xpose.msra.mxu0 0.0
    %109 = vmatprep.subr.mxu0 0.0
    %110 = vmatpush2.xpose.msra.mxu0 0.0
    %111 = vmatprep.subr.mxu0 0.0
    %112 = vmatpush2.xpose.msra.mxu0 0.0
    %113 = vmatprep.subr.mxu0 0.0
    %114 = vmatpush2.xpose.msra.mxu0 0.0
    %115 = vmatprep.subr.mxu0 0.0
    %116 = vmatpush2.xpose.msra.mxu0 0.0
    %117 = vmatprep.subr.mxu0 0.0
    %118 = vmatpush2.xpose.msra.mxu0 0.0
    %119 = vmatprep.subr.mxu0 0.0
    %120 = vmatpush2.xpose.msra.mxu0 0.0
    %121 = vmatprep.subr.mxu0 0.0
    %122 = vmatpush2.xpose.msra.mxu0 0.0
    %123 = vmatprep.subr.mxu0 0.0
    %124 = vmatpush2.xpose.msra.mxu0 0.0
    %125 = vmatprep.subr.mxu0 0.0
    %126 = vmatpush2.xpose.msra.mxu0 0.0
    %127 = vmatprep.subr.mxu0 0.0
    %128 = vmatpush2.xpose.msra.mxu0 0.0
    %129 = vmatprep.subr.mxu0 0.0
    %130 = vmatpush2.xpose.msra.mxu0 0.0
    %131 = vmatprep.subr.mxu0 0.0
    %132 = vmatpush2.xpose.msra.mxu0 0.0
    %133 = vmatprep.mubr.f32.mxu0 0.0
    %134 = vmatmul.mubr.f32.gmra.mxu0 %v48
    %v135 = vpop.f32.mrf.mxu0
    %v136 = vadd.f32 0.0, %v135
    %v137 = vpop.f32.mrf.mxu0
    %138 = vmatprep.mubr.f32.mxu0 0.0
    %139 = vmatmul.mubr.f32.gmra.mxu0 %v49
    %v140 = vpop.f32.mrf.mxu0
    %v141 = vadd.f32 0.0, %v140
    %v142 = vpop.f32.mrf.mxu0
    %143 = vdwg.mxu0
    %v144 = vadd.f32 %v67, %v136
    %v145 = vadd.f32 %v68, %v141
    %146 = vst [vmem:[#allocation2] sm:$0xff] %v144
    %147 = vst [vmem:[#allocation2 + $0x8] sm:$0xff] %v145
    %v148 = vld [vmem:[#allocation3] sm:$0xff]
    %v149 = vld [vmem:[#allocation3 + $0x8] sm:$0xff]
    %150 = vmatprep.subr.mxu0 0.0
    %151 = vmatpush1.xpose.msra.mxu0 0.0
    %152 = vmatprep.subr.mxu0 0.0
    %153 = vmatpush1.xpose.msra.mxu0 0.0
    %154 = vmatprep.subr.mxu0 0.0
    %155 = vmatpush1.xpose.msra.mxu0 0.0
    %156 = vmatprep.subr.mxu0 0.0
    %157 = vmatpush1.xpose.msra.mxu0 0.0
    %158 = vmatprep.subr.mxu0 0.0
    %159 = vmatpush1.xpose.msra.mxu0 0.0
    %160 = vmatprep.subr.mxu0 0.0
    %161 = vmatpush1.xpose.msra.mxu0 0.0
    %162 = vmatprep.subr.mxu0 0.0
    %163 = vmatpush1.xpose.msra.mxu0 0.0
    %164 = vmatprep.subr.mxu0 0.0
    %165 = vmatpush1.xpose.msra.mxu0 0.0
    %166 = vmatprep.subr.mxu0 0.0
    %167 = vmatpush1.xpose.msra.mxu0 0.0
    %168 = vmatprep.subr.mxu0 0.0
    %169 = vmatpush1.xpose.msra.mxu0 0.0
    %170 = vmatprep.subr.mxu0 0.0
    %171 = vmatpush1.xpose.msra.mxu0 0.0
    %172 = vmatprep.subr.mxu0 0.0
    %173 = vmatpush1.xpose.msra.mxu0 0.0
    %174 = vmatprep.subr.mxu0 0.0
    %175 = vmatpush1.xpose.msra.mxu0 0.0
    %176 = vmatprep.subr.mxu0 0.0
    %177 = vmatpush1.xpose.msra.mxu0 0.0
    %178 = vmatprep.subr.mxu0 0.0
    %179 = vmatpush1.xpose.msra.mxu0 0.0
    %180 = vmatprep.subr.mxu0 0.0
    %181 = vmatpush1.xpose.msra.mxu0 %v66
    %182 = vmatprep.subr.mxu0 0.0
    %183 = vmatpush2.xpose.msra.mxu0 0.0
    %184 = vmatprep.subr.mxu0 0.0
    %185 = vmatpush2.xpose.msra.mxu0 0.0
    %186 = vmatprep.subr.mxu0 0.0
    %187 = vmatpush2.xpose.msra.mxu0 0.0
    %188 = vmatprep.subr.mxu0 0.0
    %189 = vmatpush2.xpose.msra.mxu0 0.0
    %190 = vmatprep.subr.mxu0 0.0
    %191 = vmatpush2.xpose.msra.mxu0 0.0
    %192 = vmatprep.subr.mxu0 0.0
    %193 = vmatpush2.xpose.msra.mxu0 0.0
    %194 = vmatprep.subr.mxu0 0.0
    %195 = vmatpush2.xpose.msra.mxu0 0.0
    %196 = vmatprep.subr.mxu0 0.0
    %197 = vmatpush2.xpose.msra.mxu0 0.0
    %198 = vmatprep.subr.mxu0 0.0
    %199 = vmatpush2.xpose.msra.mxu0 0.0
    %200 = vmatprep.subr.mxu0 0.0
    %201 = vmatpush2.xpose.msra.mxu0 0.0
    %202 = vmatprep.subr.mxu0 0.0
    %203 = vmatpush2.xpose.msra.mxu0 0.0
    %204 = vmatprep.subr.mxu0 0.0
    %205 = vmatpush2.xpose.msra.mxu0 0.0
    %206 = vmatprep.subr.mxu0 0.0
    %207 = vmatpush2.xpose.msra.mxu0 0.0
    %208 = vmatprep.subr.mxu0 0.0
    %209 = vmatpush2.xpose.msra.mxu0 0.0
    %210 = vmatprep.subr.mxu0 0.0
    %211 = vmatpush2.xpose.msra.mxu0 0.0
    %212 = vmatprep.subr.mxu0 0.0
    %213 = vmatpush2.xpose.msra.mxu0 0.0
    %214 = vmatprep.mubr.f32.mxu0 0.0
    %215 = vmatmul.mubr.f32.gmra.mxu0 %v48
    %v216 = vpop.f32.mrf.mxu0
    %v217 = vadd.f32 0.0, %v216
    %v218 = vpop.f32.mrf.mxu0
    %219 = vmatprep.mubr.f32.mxu0 0.0
    %220 = vmatmul.mubr.f32.gmra.mxu0 %v49
    %v221 = vpop.f32.mrf.mxu0
    %v222 = vadd.f32 0.0, %v221
    %v223 = vpop.f32.mrf.mxu0
    %224 = vdwg.mxu0
    %v225 = vadd.f32 %v148, %v217
    %v226 = vadd.f32 %v149, %v222
    %vm227 = vcmask 64512
    %228 = vst.msk [vmem:[#allocation3] sm:$0xff] %vm227, %v225
    %229 = vst.msk [vmem:[#allocation3 + $0x8] sm:$0xff] %vm227, %v226
    // Predicated region
    $region34: #{tpu_custom_call.1} parent=1 // pred_check
      %p230 = pneg %p39
    $region35: #{tpu_custom_call.1} parent=1 // pred_check_branch
      %232 = sbr.rel (%p230) target = $region37
    $region36: #{tpu_custom_call.1} parent=1 // pred_region
      %s233 = sld [smem:[#allocation4]]
      %v234 = vld [vmem:[#allocation3] sm:$0xff]
      %v235 = vld [vmem:[#allocation3 + $0x8] sm:$0xff]
      %v236 = vstv %s233
      %v237 = vmul.f32 %v234, %v236
      %v238 = vmul.f32 %v235, %v236
      %v239 = vld [vmem:[%s3] sm:$0xff]
      %v240 = vld [vmem:[%s3 + $0x8] sm:$0xff]
      %v241 = vld [vmem:[%s3 + $0x10] sm:$0xff]
      %v242 = vld [vmem:[%s3 + $0x18] sm:$0xff]
      %v243 = vld [vmem:[%s3 + $0x20] sm:$0xff]
      %v244 = vld [vmem:[%s3 + $0x28] sm:$0xff]
      %v245 = vld [vmem:[%s3 + $0x30] sm:$0xff]
      %v246 = vld [vmem:[%s3 + $0x38] sm:$0xff]
      %v247 = vld [vmem:[%s3 + $0x40] sm:$0xff]
      %v248 = vld [vmem:[%s3 + $0x48] sm:$0xff]
      %v249 = vld [vmem:[%s3 + $0x50] sm:$0xff]
      %v250 = vld [vmem:[%s3 + $0x58] sm:$0xff]
      %v251 = vld [vmem:[%s3 + $0x60] sm:$0xff]
      %v252 = vld [vmem:[%s3 + $0x68] sm:$0xff]
      %v253 = vld [vmem:[%s3 + $0x70] sm:$0xff]
      %v254 = vld [vmem:[%s3 + $0x78] sm:$0xff]
      %v256 = vsel %vm227, %v237, 0
      %v259 = vsel %vm227, %v238, 0
      %v262 = vsel %vm227, %v239, 0
      %v265 = vsel %vm227, %v240, 0
      %v268 = vsel %vm227, %v241, 0
      %v271 = vsel %vm227, %v242, 0
      %v274 = vsel %vm227, %v243, 0
      %v277 = vsel %vm227, %v244, 0
      %v280 = vsel %vm227, %v245, 0
      %v283 = vsel %vm227, %v246, 0
      %v286 = vsel %vm227, %v247, 0
      %v289 = vsel %vm227, %v248, 0
      %v292 = vsel %vm227, %v249, 0
      %v295 = vsel %vm227, %v250, 0
      %v298 = vsel %vm227, %v251, 0
      %v301 = vsel %vm227, %v252, 0
      %v304 = vsel %vm227, %v253, 0
      %v307 = vsel %vm227, %v254, 0
      %309 = vmatprep.subr.mxu0 0.0
      %310 = vmatpush1.xpose.msra.mxu0 %v307
      %311 = vmatprep.subr.mxu0 0.0
      %312 = vmatpush1.xpose.msra.mxu0 %v304
      %313 = vmatprep.subr.mxu0 0.0
      %314 = vmatpush1.xpose.msra.mxu0 %v301
      %315 = vmatprep.subr.mxu0 0.0
      %316 = vmatpush1.xpose.msra.mxu0 %v298
      %317 = vmatprep.subr.mxu0 0.0
      %318 = vmatpush1.xpose.msra.mxu0 %v295
      %319 = vmatprep.subr.mxu0 0.0
      %320 = vmatpush1.xpose.msra.mxu0 %v292
      %321 = vmatprep.subr.mxu0 0.0
      %322 = vmatpush1.xpose.msra.mxu0 %v289
      %323 = vmatprep.subr.mxu0 0.0
      %324 = vmatpush1.xpose.msra.mxu0 %v286
      %325 = vmatprep.subr.mxu0 0.0
      %326 = vmatpush1.xpose.msra.mxu0 %v283
      %327 = vmatprep.subr.mxu0 0.0
      %328 = vmatpush1.xpose.msra.mxu0 %v280
      %329 = vmatprep.subr.mxu0 0.0
      %330 = vmatpush1.xpose.msra.mxu0 %v277
      %331 = vmatprep.subr.mxu0 0.0
      %332 = vmatpush1.xpose.msra.mxu0 %v274
      %333 = vmatprep.subr.mxu0 0.0
      %334 = vmatpush1.xpose.msra.mxu0 %v271
      %335 = vmatprep.subr.mxu0 0.0
      %336 = vmatpush1.xpose.msra.mxu0 %v268
      %337 = vmatprep.subr.mxu0 0.0
      %338 = vmatpush1.xpose.msra.mxu0 %v265
      %339 = vmatprep.subr.mxu0 0.0
      %340 = vmatpush1.xpose.msra.mxu0 %v262
      %341 = vmatprep.subr.mxu0 0.0
      %342 = vmatpush2.xpose.msra.mxu0 0.0
      %343 = vmatprep.subr.mxu0 0.0
      %344 = vmatpush2.xpose.msra.mxu0 0.0
      %345 = vmatprep.subr.mxu0 0.0
      %346 = vmatpush2.xpose.msra.mxu0 0.0
      %347 = vmatprep.subr.mxu0 0.0
      %348 = vmatpush2.xpose.msra.mxu0 0.0
      %349 = vmatprep.subr.mxu0 0.0
      %350 = vmatpush2.xpose.msra.mxu0 0.0
      %351 = vmatprep.subr.mxu0 0.0
      %352 = vmatpush2.xpose.msra.mxu0 0.0
      %353 = vmatprep.subr.mxu0 0.0
      %354 = vmatpush2.xpose.msra.mxu0 0.0
      %355 = vmatprep.subr.mxu0 0.0
      %356 = vmatpush2.xpose.msra.mxu0 0.0
      %357 = vmatprep.subr.mxu0 0.0
      %358 = vmatpush2.xpose.msra.mxu0 0.0
      %359 = vmatprep.subr.mxu0 0.0
      %360 = vmatpush2.xpose.msra.mxu0 0.0
      %361 = vmatprep.subr.mxu0 0.0
      %362 = vmatpush2.xpose.msra.mxu0 0.0
      %363 = vmatprep.subr.mxu0 0.0
      %364 = vmatpush2.xpose.msra.mxu0 0.0
      %365 = vmatprep.subr.mxu0 0.0
      %366 = vmatpush2.xpose.msra.mxu0 0.0
      %367 = vmatprep.subr.mxu0 0.0
      %368 = vmatpush2.xpose.msra.mxu0 0.0
      %369 = vmatprep.subr.mxu0 0.0
      %370 = vmatpush2.xpose.msra.mxu0 0.0
      %371 = vmatprep.subr.mxu0 0.0
      %372 = vmatpush2.xpose.msra.mxu0 0.0
      %373 = vmatprep.mubr.f32.mxu0 0.0
      %374 = vmatmul.mubr.f32.gmra.mxu0 %v256
      %v375 = vpop.f32.mrf.mxu0
      %v376 = vadd.f32 0.0, %v375
      %v377 = vpop.f32.mrf.mxu0
      %378 = vmatprep.mubr.f32.mxu0 0.0
      %379 = vmatmul.mubr.f32.gmra.mxu0 %v259
      %v380 = vpop.f32.mrf.mxu0
      %v381 = vadd.f32 0.0, %v380
      %v382 = vpop.f32.mrf.mxu0
      %383 = vdwg.mxu0
      %v384 = vld [vmem:[#allocation2] sm:$0xff]
      %v385 = vld [vmem:[#allocation2 + $0x8] sm:$0xff]
      %v386 = vld [vmem:[%s4] sm:$0x1]
      %v388 = vlaneseq
      %v389 = vshrl.u32 %v388, 7
      %v390 = vsub.s32 0, %v389
      %v391 = vrot.slane %v386, %v390
      %v393 = vadd.f32 %v384, %v391
      %v394 = vadd.f32 %v385, %v391
      %v395 = vadd.f32 %v393, %v376
      %v396 = vadd.f32 %v394, %v381
      %397 = vst [vmem:[#allocation8] sm:$0xff] %v395
      %398 = vst [vmem:[#allocation8 + $0x8] sm:$0xff] %v396
    $region37: #{tpu_custom_call.1} parent=1 // pred_fallthru
      _
    // Predicated region
    $region38: #{tpu_custom_call.1} parent=1 // pred_check
      _
    $region39: #{tpu_custom_call.1} parent=1 // pred_check_branch
      %400 = sbr.rel (0) target = $region41
    $region40: #{tpu_custom_call.1} parent=1 // pred_region
      %s402 = ssub.s32 256, 256
      %403 = vsyncadd [#allocation7], %s402
      %s404 = sshll.u32 [#allocation8], 4
      %s405 = int_to_ptr.vmem [resolvable:$true] %s404
      %410 = dma.vmem_to_hbm [thread:$0]  %s405, 256, %s6, [#allocation7], 128, 128, 8
    $region41: #{tpu_custom_call.1} parent=1 // pred_fallthru
      _
    // Predicated region
    $region42: #{tpu_custom_call.1} parent=1 // pred_check
      _
    $region43: #{tpu_custom_call.1} parent=1 // pred_check_branch
      %412 = sbr.rel (0) target = $region45
    $region44: #{tpu_custom_call.1} parent=1 // pred_region
      %413 = dma.done [#allocation7], 256
    $region45: #{tpu_custom_call.1} parent=1 // pred_fallthru
      _
    %414 = vsyncpa [#allocation6], 1
    %415 = vsyncpa [#allocation7], 1

</llo_original>
